<compile_context>
chip_gen: v5e
topology: v5e:2x2
jax: 0.10.0
libtpu: 0.0.40
codegen_flags: <defaults>
</compile_context>

<pallas_src>
import math
from types import SimpleNamespace

import jax
import jax.numpy as jnp
from jax import lax
from jax.experimental import pallas as pl
from jax.experimental.pallas import tpu as pltpu

MODALITY_ORDER = ("structure", "relation", "attribute", "image", "name", "char")
_NORM_EPS_SQ = 1e-24  # (F.normalize eps = 1e-12) ** 2


# ---------------------------------------------------------------------------
# Fused Pallas kernel: GCN + 5 Linears + PMFusion mask/normalize
# ---------------------------------------------------------------------------
def _pmf_fused_kernel(ent_ref, adj_ref,
                      gcn_w1_ref, gcn_b1_ref, gcn_w2_ref, gcn_b2_ref,
                      rel_x_ref, rel_w_ref, rel_b_ref,
                      att_x_ref, att_w_ref, att_b_ref,
                      img_x_ref, img_w_ref, img_b_ref,
                      name_x_ref, name_w_ref, name_b_ref,
                      char_x_ref, char_w_ref, char_b_ref,
                      mask_ref,
                      all_ref, joint_ref):
    adj = adj_ref[...]

    # ---- structure encoder: two-layer GCN (eval mode; dropout = identity) ----
    h = jnp.dot(ent_ref[...], gcn_w1_ref[...], preferred_element_type=jnp.float32)
    h = jnp.dot(adj, h, preferred_element_type=jnp.float32) + gcn_b1_ref[...]
    h = jnp.maximum(h, 0.0)
    h = jnp.dot(h, gcn_w2_ref[...], preferred_element_type=jnp.float32)
    gph = jnp.dot(adj, h, preferred_element_type=jnp.float32) + gcn_b2_ref[...]

    # ---- modal encoders: x @ W + b (K dims pre-padded to multiples of 128) ----
    def lin(x_ref, w_ref, b_ref):
        return jnp.dot(x_ref[...], w_ref[...],
                       preferred_element_type=jnp.float32) + b_ref[...]

    rel = lin(rel_x_ref, rel_w_ref, rel_b_ref)
    att = lin(att_x_ref, att_w_ref, att_b_ref)
    img = lin(img_x_ref, img_w_ref, img_b_ref)
    name = lin(name_x_ref, name_w_ref, name_b_ref)
    char = lin(char_x_ref, char_w_ref, char_b_ref)

    # ---- PMFusion: write raw + masked/normalized embeddings as (N, M*D) slabs ----
    mask = mask_ref[...]                      # (N, M), float32
    embs = (gph, rel, att, img, name, char)   # emb_dict insertion order
    for m, e in enumerate(embs):
        d = e.shape[-1]
        all_ref[:, m * d:(m + 1) * d] = e
        x = e * mask[:, m:m + 1]
        ss = jnp.sum(x * x, axis=-1, keepdims=True)
        inv = lax.rsqrt(jnp.maximum(ss, _NORM_EPS_SQ))   # EUP rsqrt (free slot)
        joint_ref[:, m * d:(m + 1) * d] = x * inv


# ---------------------------------------------------------------------------
# PMF_Encoder forward (Pallas-backed)
# ---------------------------------------------------------------------------
def pmf_encoder_forward(params, input_idx, adj, mask_arr,
                        img_features, rel_features, att_features,
                        name_features, char_features):
    # entity embedding lookup (glue)
    ent = params["entity_emb"][input_idx]
    N = ent.shape[0]
    D = params["gcn_w1"].shape[1]
    M = len(MODALITY_ORDER)

    # zero-pad ragged contraction dims to multiples of 128 (result unchanged)
    def prep(x, w):
        k = x.shape[1]
        kp = ((k + 127) // 128) * 128
        if kp != k:
            x = jnp.pad(x, ((0, 0), (0, kp - k)))
            w = jnp.pad(w, ((0, kp - k), (0, 0)))
        return x, w

    rel_x, rel_w = prep(rel_features, params["rel_w"])
    att_x, att_w = prep(att_features, params["att_w"])
    img_x, img_w = prep(img_features, params["img_w"])
    name_x, name_w = prep(name_features, params["name_w"])
    char_x, char_w = prep(char_features, params["char_w"])

    mask_t = mask_arr.T.astype(jnp.float32)   # (N, M): broadcast happens in-kernel

    vmem = pl.BlockSpec(memory_space=pltpu.MemorySpace.VMEM)
    all_embs, joint_emb = pl.pallas_call(
        _pmf_fused_kernel,
        in_specs=[vmem] * 22,
        out_specs=(vmem, vmem),
        out_shape=(jax.ShapeDtypeStruct((N, M * D), jnp.float32),
                   jax.ShapeDtypeStruct((N, M * D), jnp.float32)),
    )(ent, adj,
      params["gcn_w1"], params["gcn_b1"].reshape(1, -1),
      params["gcn_w2"], params["gcn_b2"].reshape(1, -1),
      rel_x, rel_w, params["rel_b"].reshape(1, -1),
      att_x, att_w, params["att_b"].reshape(1, -1),
      img_x, img_w, params["img_b"].reshape(1, -1),
      name_x, name_w, params["name_b"].reshape(1, -1),
      char_x, char_w, params["char_b"].reshape(1, -1),
      mask_t)

    # hidden_states == torch.stack(embs, dim=1); slab layout makes this a free reshape
    hidden_states = all_embs.reshape(N, M, D)
    gph_emb = all_embs[:, 0 * D:1 * D]
    rel_emb = all_embs[:, 1 * D:2 * D]
    att_emb = all_embs[:, 2 * D:3 * D]
    img_emb = all_embs[:, 3 * D:4 * D]
    name_emb = all_embs[:, 4 * D:5 * D]
    char_emb = all_embs[:, 5 * D:6 * D]

    weight_norm = None
    return (gph_emb, img_emb, rel_emb, att_emb, name_emb, char_emb,
            joint_emb, hidden_states, weight_norm)


# ---------------------------------------------------------------------------
# Pure-JAX reference (semantics mirror of the torch forward)
# ---------------------------------------------------------------------------
def reference_forward(params, input_idx, adj, mask_arr,
                      img_features, rel_features, att_features,
                      name_features, char_features):
    ent = params["entity_emb"][input_idx]
    h = jnp.maximum(adj @ (ent @ params["gcn_w1"]) + params["gcn_b1"], 0.0)
    gph_emb = adj @ (h @ params["gcn_w2"]) + params["gcn_b2"]
    img_emb = img_features @ params["img_w"] + params["img_b"]
    rel_emb = rel_features @ params["rel_w"] + params["rel_b"]
    att_emb = att_features @ params["att_w"] + params["att_b"]
    name_emb = name_features @ params["name_w"] + params["name_b"]
    char_emb = char_features @ params["char_w"] + params["char_b"]
    embs = [gph_emb, rel_emb, att_emb, img_emb, name_emb, char_emb]
    hidden_states = jnp.stack(embs, axis=1)

    def normalize(x):
        return x / jnp.maximum(jnp.linalg.norm(x, axis=1, keepdims=True), 1e-12)

    normed = [normalize(e * mask_arr[m][:, None]) for m, e in enumerate(embs)]
    joint_emb = jnp.concatenate(normed, axis=1)
    return gph_emb, img_emb, rel_emb, att_emb, name_emb, char_emb, joint_emb, hidden_states, None


# ---------------------------------------------------------------------------
if __name__ == "__main__":
    # ----- args (mirrors the torch module's config), small dims -----
    args = SimpleNamespace(
        hidden_units="32,32,32", heads="2,2",
        attr_dim=32, img_dim=32, name_dim=32, char_dim=32,
        dropout=0.0, attn_dropout=0.0, instance_normalization=False,
        structure_encoder="gcn", inner_view_num=6, with_weight=1,
        w_gcn=True, w_img=True, w_rel=True, w_attr=True, w_name=True, w_char=True,
    )
    ENT_NUM = 8
    IMG_FEAT_DIM = 64
    ATTR_INPUT_DIM = 48
    CHAR_FEAT_DIM = 24
    REL_FEAT_DIM = 1000    # hard-coded in rel_fc = nn.Linear(1000, attr_dim)
    NAME_FEAT_DIM = 300    # hard-coded in name_fc = nn.Linear(300, char_dim)
    D = 32                 # common output dim of every modal encoder

    key = jax.random.PRNGKey(0)
    ks = jax.random.split(key, 24)

    def lin_params(kw, kb, fin, fout):
        lim = 1.0 / math.sqrt(fin)
        w = jax.random.uniform(kw, (fin, fout), jnp.float32, -lim, lim)
        b = jax.random.uniform(kb, (fout,), jnp.float32, -lim, lim)
        return w, b

    params = {}
    params["entity_emb"] = (1.0 / math.sqrt(ENT_NUM)) * jax.random.normal(
        ks[0], (ENT_NUM, D), jnp.float32)
    params["gcn_w1"], params["gcn_b1"] = lin_params(ks[1], ks[2], D, D)
    params["gcn_w2"], params["gcn_b2"] = lin_params(ks[3], ks[4], D, D)
    params["rel_w"], params["rel_b"] = lin_params(ks[5], ks[6], REL_FEAT_DIM, args.attr_dim)
    params["att_w"], params["att_b"] = lin_params(ks[7], ks[8], ATTR_INPUT_DIM, args.attr_dim)
    params["img_w"], params["img_b"] = lin_params(ks[9], ks[10], IMG_FEAT_DIM, args.img_dim)
    params["name_w"], params["name_b"] = lin_params(ks[11], ks[12], NAME_FEAT_DIM, args.char_dim)
    params["char_w"], params["char_b"] = lin_params(ks[13], ks[14], CHAR_FEAT_DIM, args.char_dim)

    # ----- inputs -----
    input_idx = jnp.arange(ENT_NUM, dtype=jnp.int32)
    a = jax.random.uniform(ks[15], (ENT_NUM, ENT_NUM), jnp.float32)
    a = a + a.T + jnp.eye(ENT_NUM, dtype=jnp.float32)
    adj = a / jnp.sum(a, axis=1, keepdims=True)            # row-normalized dense adjacency

    # mask dict -> array in modality order (structure, relation, attribute, image, name, char)
    mask_arr = (jax.random.uniform(ks[16], (len(MODALITY_ORDER), ENT_NUM)) > 0.25
                ).astype(jnp.float32)

    img_features = jax.random.normal(ks[17], (ENT_NUM, IMG_FEAT_DIM), jnp.float32)
    rel_features = jax.random.normal(ks[18], (ENT_NUM, REL_FEAT_DIM), jnp.float32)
    att_features = jax.random.normal(ks[19], (ENT_NUM, ATTR_INPUT_DIM), jnp.float32)
    name_features = jax.random.normal(ks[20], (ENT_NUM, NAME_FEAT_DIM), jnp.float32)
    char_features = jax.random.normal(ks[21], (ENT_NUM, CHAR_FEAT_DIM), jnp.float32)

    # ----- run Pallas-backed (fused) forward -----
    fwd = jax.jit(pmf_encoder_forward)
    outs = fwd(params, input_idx, adj, mask_arr,
               img_features, rel_features, att_features,
               name_features, char_features)
    outs = jax.block_until_ready([o for o in outs if o is not None])

    # ----- correctness check against pure-JAX reference -----
    refs = reference_forward(params, input_idx, adj, mask_arr,
                             img_features, rel_features, att_features,
                             name_features, char_features)
    names = ["gph_emb", "img_emb", "rel_emb", "att_emb", "name_emb", "char_emb",
             "joint_emb", "hidden_states"]
    for name, got, ref in zip(names, outs, refs):
        if not jnp.allclose(got, ref, rtol=1e-4, atol=1e-4):
            raise AssertionError(f"mismatch in {name}")

    print("KERNEL_OK")
</pallas_src>

<mosaic_0001>
module attributes {stable_mosaic.version = 11 : i64} {
  func.func @_pmf_fused_kernel(%arg0: memref<8x32xf32, #tpu.memory_space<vmem>>, %arg1: memref<8x8xf32, #tpu.memory_space<vmem>>, %arg2: memref<32x32xf32, #tpu.memory_space<vmem>>, %arg3: memref<1x32xf32, #tpu.memory_space<vmem>>, %arg4: memref<32x32xf32, #tpu.memory_space<vmem>>, %arg5: memref<1x32xf32, #tpu.memory_space<vmem>>, %arg6: memref<8x1024xf32, #tpu.memory_space<vmem>>, %arg7: memref<1024x32xf32, #tpu.memory_space<vmem>>, %arg8: memref<1x32xf32, #tpu.memory_space<vmem>>, %arg9: memref<8x128xf32, #tpu.memory_space<vmem>>, %arg10: memref<128x32xf32, #tpu.memory_space<vmem>>, %arg11: memref<1x32xf32, #tpu.memory_space<vmem>>, %arg12: memref<8x128xf32, #tpu.memory_space<vmem>>, %arg13: memref<128x32xf32, #tpu.memory_space<vmem>>, %arg14: memref<1x32xf32, #tpu.memory_space<vmem>>, %arg15: memref<8x384xf32, #tpu.memory_space<vmem>>, %arg16: memref<384x32xf32, #tpu.memory_space<vmem>>, %arg17: memref<1x32xf32, #tpu.memory_space<vmem>>, %arg18: memref<8x128xf32, #tpu.memory_space<vmem>>, %arg19: memref<128x32xf32, #tpu.memory_space<vmem>>, %arg20: memref<1x32xf32, #tpu.memory_space<vmem>>, %arg21: memref<8x6xf32, #tpu.memory_space<vmem>>, %arg22: memref<8x192xf32, #tpu.memory_space<vmem>>, %arg23: memref<8x192xf32, #tpu.memory_space<vmem>>) attributes {dimension_semantics = [], scalar_prefetch = 0 : i64, scratch_operands = 0 : i64, tpu.core_type = #tpu.core_type<tc>} {
    %c0 = arith.constant 0 : index
    %c0_0 = arith.constant 0 : index
    %0 = vector.load %arg1[%c0, %c0_0] : memref<8x8xf32, #tpu.memory_space<vmem>>, vector<8x8xf32>
    %c0_1 = arith.constant 0 : index
    %c0_2 = arith.constant 0 : index
    %1 = vector.load %arg0[%c0_1, %c0_2] : memref<8x32xf32, #tpu.memory_space<vmem>>, vector<8x32xf32>
    %c0_3 = arith.constant 0 : index
    %c0_4 = arith.constant 0 : index
    %2 = vector.load %arg2[%c0_3, %c0_4] : memref<32x32xf32, #tpu.memory_space<vmem>>, vector<32x32xf32>
    %cst = arith.constant dense<0.000000e+00> : vector<8x32xf32>
    %3 = tpu.matmul %1, %2, %cst {dimension_numbers = #tpu.dot_dimension_numbers<[1], [0], [0], [1], [0, 0, 1, 1], [], []>} : vector<8x32xf32>, vector<32x32xf32>, vector<8x32xf32> -> vector<8x32xf32>
    %cst_5 = arith.constant dense<0.000000e+00> : vector<8x32xf32>
    %4 = tpu.matmul %0, %3, %cst_5 {dimension_numbers = #tpu.dot_dimension_numbers<[1], [0], [0], [1], [0, 0, 1, 1], [], []>} : vector<8x8xf32>, vector<8x32xf32>, vector<8x32xf32> -> vector<8x32xf32>
    %c0_6 = arith.constant 0 : index
    %c0_7 = arith.constant 0 : index
    %5 = vector.load %arg3[%c0_6, %c0_7] : memref<1x32xf32, #tpu.memory_space<vmem>>, vector<1x32xf32>
    %6 = vector.broadcast %5 : vector<1x32xf32> to vector<8x32xf32>
    %7 = arith.addf %4, %6 : vector<8x32xf32>
    %cst_8 = arith.constant 0.000000e+00 : f32
    %8 = vector.broadcast %cst_8 : f32 to vector<8x32xf32>
    %9 = arith.maximumf %7, %8 : vector<8x32xf32>
    %c0_9 = arith.constant 0 : index
    %c0_10 = arith.constant 0 : index
    %10 = vector.load %arg4[%c0_9, %c0_10] : memref<32x32xf32, #tpu.memory_space<vmem>>, vector<32x32xf32>
    %cst_11 = arith.constant dense<0.000000e+00> : vector<8x32xf32>
    %11 = tpu.matmul %9, %10, %cst_11 {dimension_numbers = #tpu.dot_dimension_numbers<[1], [0], [0], [1], [0, 0, 1, 1], [], []>} : vector<8x32xf32>, vector<32x32xf32>, vector<8x32xf32> -> vector<8x32xf32>
    %cst_12 = arith.constant dense<0.000000e+00> : vector<8x32xf32>
    %12 = tpu.matmul %0, %11, %cst_12 {dimension_numbers = #tpu.dot_dimension_numbers<[1], [0], [0], [1], [0, 0, 1, 1], [], []>} : vector<8x8xf32>, vector<8x32xf32>, vector<8x32xf32> -> vector<8x32xf32>
    %c0_13 = arith.constant 0 : index
    %c0_14 = arith.constant 0 : index
    %13 = vector.load %arg5[%c0_13, %c0_14] : memref<1x32xf32, #tpu.memory_space<vmem>>, vector<1x32xf32>
    %14 = vector.broadcast %13 : vector<1x32xf32> to vector<8x32xf32>
    %15 = arith.addf %12, %14 : vector<8x32xf32>
    %c0_15 = arith.constant 0 : index
    %c0_16 = arith.constant 0 : index
    %16 = vector.load %arg6[%c0_15, %c0_16] : memref<8x1024xf32, #tpu.memory_space<vmem>>, vector<8x1024xf32>
    %c0_17 = arith.constant 0 : index
    %c0_18 = arith.constant 0 : index
    %17 = vector.load %arg7[%c0_17, %c0_18] : memref<1024x32xf32, #tpu.memory_space<vmem>>, vector<1024x32xf32>
    %cst_19 = arith.constant dense<0.000000e+00> : vector<8x32xf32>
    %18 = tpu.matmul %16, %17, %cst_19 {dimension_numbers = #tpu.dot_dimension_numbers<[1], [0], [0], [1], [0, 0, 1, 1], [], []>} : vector<8x1024xf32>, vector<1024x32xf32>, vector<8x32xf32> -> vector<8x32xf32>
    %c0_20 = arith.constant 0 : index
    %c0_21 = arith.constant 0 : index
    %19 = vector.load %arg8[%c0_20, %c0_21] : memref<1x32xf32, #tpu.memory_space<vmem>>, vector<1x32xf32>
    %20 = vector.broadcast %19 : vector<1x32xf32> to vector<8x32xf32>
    %21 = arith.addf %18, %20 : vector<8x32xf32>
    %c0_22 = arith.constant 0 : index
    %c0_23 = arith.constant 0 : index
    %22 = vector.load %arg9[%c0_22, %c0_23] : memref<8x128xf32, #tpu.memory_space<vmem>>, vector<8x128xf32>
    %c0_24 = arith.constant 0 : index
    %c0_25 = arith.constant 0 : index
    %23 = vector.load %arg10[%c0_24, %c0_25] : memref<128x32xf32, #tpu.memory_space<vmem>>, vector<128x32xf32>
    %cst_26 = arith.constant dense<0.000000e+00> : vector<8x32xf32>
    %24 = tpu.matmul %22, %23, %cst_26 {dimension_numbers = #tpu.dot_dimension_numbers<[1], [0], [0], [1], [0, 0, 1, 1], [], []>} : vector<8x128xf32>, vector<128x32xf32>, vector<8x32xf32> -> vector<8x32xf32>
    %c0_27 = arith.constant 0 : index
    %c0_28 = arith.constant 0 : index
    %25 = vector.load %arg11[%c0_27, %c0_28] : memref<1x32xf32, #tpu.memory_space<vmem>>, vector<1x32xf32>
    %26 = vector.broadcast %25 : vector<1x32xf32> to vector<8x32xf32>
    %27 = arith.addf %24, %26 : vector<8x32xf32>
    %c0_29 = arith.constant 0 : index
    %c0_30 = arith.constant 0 : index
    %28 = vector.load %arg12[%c0_29, %c0_30] : memref<8x128xf32, #tpu.memory_space<vmem>>, vector<8x128xf32>
    %c0_31 = arith.constant 0 : index
    %c0_32 = arith.constant 0 : index
    %29 = vector.load %arg13[%c0_31, %c0_32] : memref<128x32xf32, #tpu.memory_space<vmem>>, vector<128x32xf32>
    %cst_33 = arith.constant dense<0.000000e+00> : vector<8x32xf32>
    %30 = tpu.matmul %28, %29, %cst_33 {dimension_numbers = #tpu.dot_dimension_numbers<[1], [0], [0], [1], [0, 0, 1, 1], [], []>} : vector<8x128xf32>, vector<128x32xf32>, vector<8x32xf32> -> vector<8x32xf32>
    %c0_34 = arith.constant 0 : index
    %c0_35 = arith.constant 0 : index
    %31 = vector.load %arg14[%c0_34, %c0_35] : memref<1x32xf32, #tpu.memory_space<vmem>>, vector<1x32xf32>
    %32 = vector.broadcast %31 : vector<1x32xf32> to vector<8x32xf32>
    %33 = arith.addf %30, %32 : vector<8x32xf32>
    %c0_36 = arith.constant 0 : index
    %c0_37 = arith.constant 0 : index
    %34 = vector.load %arg15[%c0_36, %c0_37] : memref<8x384xf32, #tpu.memory_space<vmem>>, vector<8x384xf32>
    %c0_38 = arith.constant 0 : index
    %c0_39 = arith.constant 0 : index
    %35 = vector.load %arg16[%c0_38, %c0_39] : memref<384x32xf32, #tpu.memory_space<vmem>>, vector<384x32xf32>
    %cst_40 = arith.constant dense<0.000000e+00> : vector<8x32xf32>
    %36 = tpu.matmul %34, %35, %cst_40 {dimension_numbers = #tpu.dot_dimension_numbers<[1], [0], [0], [1], [0, 0, 1, 1], [], []>} : vector<8x384xf32>, vector<384x32xf32>, vector<8x32xf32> -> vector<8x32xf32>
    %c0_41 = arith.constant 0 : index
    %c0_42 = arith.constant 0 : index
    %37 = vector.load %arg17[%c0_41, %c0_42] : memref<1x32xf32, #tpu.memory_space<vmem>>, vector<1x32xf32>
    %38 = vector.broadcast %37 : vector<1x32xf32> to vector<8x32xf32>
    %39 = arith.addf %36, %38 : vector<8x32xf32>
    %c0_43 = arith.constant 0 : index
    %c0_44 = arith.constant 0 : index
    %40 = vector.load %arg18[%c0_43, %c0_44] : memref<8x128xf32, #tpu.memory_space<vmem>>, vector<8x128xf32>
    %c0_45 = arith.constant 0 : index
    %c0_46 = arith.constant 0 : index
    %41 = vector.load %arg19[%c0_45, %c0_46] : memref<128x32xf32, #tpu.memory_space<vmem>>, vector<128x32xf32>
    %cst_47 = arith.constant dense<0.000000e+00> : vector<8x32xf32>
    %42 = tpu.matmul %40, %41, %cst_47 {dimension_numbers = #tpu.dot_dimension_numbers<[1], [0], [0], [1], [0, 0, 1, 1], [], []>} : vector<8x128xf32>, vector<128x32xf32>, vector<8x32xf32> -> vector<8x32xf32>
    %c0_48 = arith.constant 0 : index
    %c0_49 = arith.constant 0 : index
    %43 = vector.load %arg20[%c0_48, %c0_49] : memref<1x32xf32, #tpu.memory_space<vmem>>, vector<1x32xf32>
    %44 = vector.broadcast %43 : vector<1x32xf32> to vector<8x32xf32>
    %45 = arith.addf %42, %44 : vector<8x32xf32>
    %c0_50 = arith.constant 0 : index
    %c0_51 = arith.constant 0 : index
    %46 = vector.load %arg21[%c0_50, %c0_51] : memref<8x6xf32, #tpu.memory_space<vmem>>, vector<8x6xf32>
    %c0_52 = arith.constant 0 : index
    %c0_53 = arith.constant 0 : index
    %47 = vector.load %arg22[%c0_52, %c0_53] : memref<8x192xf32, #tpu.memory_space<vmem>>, vector<8x32xf32>
    tpu.vector_store %arg22[%c0_52, %c0_53], %15 {strides = array<i32>} : memref<8x192xf32, #tpu.memory_space<vmem>>, vector<8x32xf32>,
    %48 = vector.extract_strided_slice %46 {offsets = [0, 0], sizes = [8, 1], strides = [1, 1]} : vector<8x6xf32> to vector<8x1xf32>
    %49 = vector.broadcast %48 : vector<8x1xf32> to vector<8x32xf32>
    %50 = arith.mulf %15, %49 : vector<8x32xf32>
    %51 = arith.mulf %50, %50 : vector<8x32xf32>
    %cst_54 = arith.constant dense<0.000000e+00> : vector<8xf32>
    %52 = vector.multi_reduction <add>, %51, %cst_54 [1] : vector<8x32xf32> to vector<8xf32>
    %53 = vector.shape_cast %52 : vector<8xf32> to vector<8x1xf32>
    %cst_55 = arith.constant 1.000000e-24 : f32
    %54 = vector.broadcast %cst_55 : f32 to vector<8x1xf32>
    %55 = arith.maximumf %53, %54 : vector<8x1xf32>
    %56 = math.rsqrt %55 : vector<8x1xf32>
    %57 = vector.broadcast %56 : vector<8x1xf32> to vector<8x32xf32>
    %58 = arith.mulf %50, %57 : vector<8x32xf32>
    %c0_56 = arith.constant 0 : index
    %c0_57 = arith.constant 0 : index
    %59 = vector.load %arg23[%c0_56, %c0_57] : memref<8x192xf32, #tpu.memory_space<vmem>>, vector<8x32xf32>
    tpu.vector_store %arg23[%c0_56, %c0_57], %58 {strides = array<i32>} : memref<8x192xf32, #tpu.memory_space<vmem>>, vector<8x32xf32>,
    %c0_58 = arith.constant 0 : index
    %c32 = arith.constant 32 : index
    %60 = vector.load %arg22[%c0_58, %c32] : memref<8x192xf32, #tpu.memory_space<vmem>>, vector<8x32xf32>
    tpu.vector_store %arg22[%c0_58, %c32], %21 {strides = array<i32>} : memref<8x192xf32, #tpu.memory_space<vmem>>, vector<8x32xf32>,
    %61 = vector.extract_strided_slice %46 {offsets = [0, 1], sizes = [8, 1], strides = [1, 1]} : vector<8x6xf32> to vector<8x1xf32>
    %62 = vector.broadcast %61 : vector<8x1xf32> to vector<8x32xf32>
    %63 = arith.mulf %21, %62 : vector<8x32xf32>
    %64 = arith.mulf %63, %63 : vector<8x32xf32>
    %cst_59 = arith.constant dense<0.000000e+00> : vector<8xf32>
    %65 = vector.multi_reduction <add>, %64, %cst_59 [1] : vector<8x32xf32> to vector<8xf32>
    %66 = vector.shape_cast %65 : vector<8xf32> to vector<8x1xf32>
    %cst_60 = arith.constant 1.000000e-24 : f32
    %67 = vector.broadcast %cst_60 : f32 to vector<8x1xf32>
    %68 = arith.maximumf %66, %67 : vector<8x1xf32>
    %69 = math.rsqrt %68 : vector<8x1xf32>
    %70 = vector.broadcast %69 : vector<8x1xf32> to vector<8x32xf32>
    %71 = arith.mulf %63, %70 : vector<8x32xf32>
    %c0_61 = arith.constant 0 : index
    %c32_62 = arith.constant 32 : index
    %72 = vector.load %arg23[%c0_61, %c32_62] : memref<8x192xf32, #tpu.memory_space<vmem>>, vector<8x32xf32>
    tpu.vector_store %arg23[%c0_61, %c32_62], %71 {strides = array<i32>} : memref<8x192xf32, #tpu.memory_space<vmem>>, vector<8x32xf32>,
    %c0_63 = arith.constant 0 : index
    %c64 = arith.constant 64 : index
    %73 = vector.load %arg22[%c0_63, %c64] : memref<8x192xf32, #tpu.memory_space<vmem>>, vector<8x32xf32>
    tpu.vector_store %arg22[%c0_63, %c64], %27 {strides = array<i32>} : memref<8x192xf32, #tpu.memory_space<vmem>>, vector<8x32xf32>,
    %74 = vector.extract_strided_slice %46 {offsets = [0, 2], sizes = [8, 1], strides = [1, 1]} : vector<8x6xf32> to vector<8x1xf32>
    %75 = vector.broadcast %74 : vector<8x1xf32> to vector<8x32xf32>
    %76 = arith.mulf %27, %75 : vector<8x32xf32>
    %77 = arith.mulf %76, %76 : vector<8x32xf32>
    %cst_64 = arith.constant dense<0.000000e+00> : vector<8xf32>
    %78 = vector.multi_reduction <add>, %77, %cst_64 [1] : vector<8x32xf32> to vector<8xf32>
    %79 = vector.shape_cast %78 : vector<8xf32> to vector<8x1xf32>
    %cst_65 = arith.constant 1.000000e-24 : f32
    %80 = vector.broadcast %cst_65 : f32 to vector<8x1xf32>
    %81 = arith.maximumf %79, %80 : vector<8x1xf32>
    %82 = math.rsqrt %81 : vector<8x1xf32>
    %83 = vector.broadcast %82 : vector<8x1xf32> to vector<8x32xf32>
    %84 = arith.mulf %76, %83 : vector<8x32xf32>
    %c0_66 = arith.constant 0 : index
    %c64_67 = arith.constant 64 : index
    %85 = vector.load %arg23[%c0_66, %c64_67] : memref<8x192xf32, #tpu.memory_space<vmem>>, vector<8x32xf32>
    tpu.vector_store %arg23[%c0_66, %c64_67], %84 {strides = array<i32>} : memref<8x192xf32, #tpu.memory_space<vmem>>, vector<8x32xf32>,
    %c0_68 = arith.constant 0 : index
    %c96 = arith.constant 96 : index
    %86 = vector.load %arg22[%c0_68, %c96] : memref<8x192xf32, #tpu.memory_space<vmem>>, vector<8x32xf32>
    tpu.vector_store %arg22[%c0_68, %c96], %33 {strides = array<i32>} : memref<8x192xf32, #tpu.memory_space<vmem>>, vector<8x32xf32>,
    %87 = vector.extract_strided_slice %46 {offsets = [0, 3], sizes = [8, 1], strides = [1, 1]} : vector<8x6xf32> to vector<8x1xf32>
    %88 = vector.broadcast %87 : vector<8x1xf32> to vector<8x32xf32>
    %89 = arith.mulf %33, %88 : vector<8x32xf32>
    %90 = arith.mulf %89, %89 : vector<8x32xf32>
    %cst_69 = arith.constant dense<0.000000e+00> : vector<8xf32>
    %91 = vector.multi_reduction <add>, %90, %cst_69 [1] : vector<8x32xf32> to vector<8xf32>
    %92 = vector.shape_cast %91 : vector<8xf32> to vector<8x1xf32>
    %cst_70 = arith.constant 1.000000e-24 : f32
    %93 = vector.broadcast %cst_70 : f32 to vector<8x1xf32>
    %94 = arith.maximumf %92, %93 : vector<8x1xf32>
    %95 = math.rsqrt %94 : vector<8x1xf32>
    %96 = vector.broadcast %95 : vector<8x1xf32> to vector<8x32xf32>
    %97 = arith.mulf %89, %96 : vector<8x32xf32>
    %c0_71 = arith.constant 0 : index
    %c96_72 = arith.constant 96 : index
    %98 = vector.load %arg23[%c0_71, %c96_72] : memref<8x192xf32, #tpu.memory_space<vmem>>, vector<8x32xf32>
    tpu.vector_store %arg23[%c0_71, %c96_72], %97 {strides = array<i32>} : memref<8x192xf32, #tpu.memory_space<vmem>>, vector<8x32xf32>,
    %c0_73 = arith.constant 0 : index
    %c128 = arith.constant 128 : index
    %99 = vector.load %arg22[%c0_73, %c128] : memref<8x192xf32, #tpu.memory_space<vmem>>, vector<8x32xf32>
    tpu.vector_store %arg22[%c0_73, %c128], %39 {strides = array<i32>} : memref<8x192xf32, #tpu.memory_space<vmem>>, vector<8x32xf32>,
    %100 = vector.extract_strided_slice %46 {offsets = [0, 4], sizes = [8, 1], strides = [1, 1]} : vector<8x6xf32> to vector<8x1xf32>
    %101 = vector.broadcast %100 : vector<8x1xf32> to vector<8x32xf32>
    %102 = arith.mulf %39, %101 : vector<8x32xf32>
    %103 = arith.mulf %102, %102 : vector<8x32xf32>
    %cst_74 = arith.constant dense<0.000000e+00> : vector<8xf32>
    %104 = vector.multi_reduction <add>, %103, %cst_74 [1] : vector<8x32xf32> to vector<8xf32>
    %105 = vector.shape_cast %104 : vector<8xf32> to vector<8x1xf32>
    %cst_75 = arith.constant 1.000000e-24 : f32
    %106 = vector.broadcast %cst_75 : f32 to vector<8x1xf32>
    %107 = arith.maximumf %105, %106 : vector<8x1xf32>
    %108 = math.rsqrt %107 : vector<8x1xf32>
    %109 = vector.broadcast %108 : vector<8x1xf32> to vector<8x32xf32>
    %110 = arith.mulf %102, %109 : vector<8x32xf32>
    %c0_76 = arith.constant 0 : index
    %c128_77 = arith.constant 128 : index
    %111 = vector.load %arg23[%c0_76, %c128_77] : memref<8x192xf32, #tpu.memory_space<vmem>>, vector<8x32xf32>
    tpu.vector_store %arg23[%c0_76, %c128_77], %110 {strides = array<i32>} : memref<8x192xf32, #tpu.memory_space<vmem>>, vector<8x32xf32>,
    %c0_78 = arith.constant 0 : index
    %c160 = arith.constant 160 : index
    %112 = vector.load %arg22[%c0_78, %c160] : memref<8x192xf32, #tpu.memory_space<vmem>>, vector<8x32xf32>
    tpu.vector_store %arg22[%c0_78, %c160], %45 {strides = array<i32>} : memref<8x192xf32, #tpu.memory_space<vmem>>, vector<8x32xf32>,
    %113 = vector.extract_strided_slice %46 {offsets = [0, 5], sizes = [8, 1], strides = [1, 1]} : vector<8x6xf32> to vector<8x1xf32>
    %114 = vector.broadcast %113 : vector<8x1xf32> to vector<8x32xf32>
    %115 = arith.mulf %45, %114 : vector<8x32xf32>
    %116 = arith.mulf %115, %115 : vector<8x32xf32>
    %cst_79 = arith.constant dense<0.000000e+00> : vector<8xf32>
    %117 = vector.multi_reduction <add>, %116, %cst_79 [1] : vector<8x32xf32> to vector<8xf32>
    %118 = vector.shape_cast %117 : vector<8xf32> to vector<8x1xf32>
    %cst_80 = arith.constant 1.000000e-24 : f32
    %119 = vector.broadcast %cst_80 : f32 to vector<8x1xf32>
    %120 = arith.maximumf %118, %119 : vector<8x1xf32>
    %121 = math.rsqrt %120 : vector<8x1xf32>
    %122 = vector.broadcast %121 : vector<8x1xf32> to vector<8x32xf32>
    %123 = arith.mulf %115, %122 : vector<8x32xf32>
    %c0_81 = arith.constant 0 : index
    %c160_82 = arith.constant 160 : index
    %124 = vector.load %arg23[%c0_81, %c160_82] : memref<8x192xf32, #tpu.memory_space<vmem>>, vector<8x32xf32>
    tpu.vector_store %arg23[%c0_81, %c160_82], %123 {strides = array<i32>} : memref<8x192xf32, #tpu.memory_space<vmem>>, vector<8x32xf32>,
    return
  }
}

</mosaic_0001>

<llo_original>
// kernel: pmf_encoder_forward.1
$region0: #{pmf_encoder_forward.1}
  #allocation0 [shape = 'u32[]', space=smem, size = 0x4, offset = 0x4, fixed_abs, tag = 'smem constant byte address 0x4 - core index']
  #allocation1 [shape = 'u32[72,128]{1,0:T(1,128)}', space=vmem, size = 0x9000, scoped, tag = 'internal scratch']
  %s0 = inlined_call_operand.vmem [shape: f32[8,32], index: 0, kind: input, shape index: {}]
  %s1 = inlined_call_operand.vmem [shape: f32[8,8], index: 1, kind: input, shape index: {}]
  %s2 = inlined_call_operand.vmem [shape: f32[32,32], index: 2, kind: input, shape index: {}]
  %s3 = inlined_call_operand.vmem [shape: f32[1,32], index: 3, kind: input, shape index: {}]
  %s4 = inlined_call_operand.vmem [shape: f32[32,32], index: 4, kind: input, shape index: {}]
  %s5 = inlined_call_operand.vmem [shape: f32[1,32], index: 5, kind: input, shape index: {}]
  %s6 = inlined_call_operand.vmem [shape: f32[8,1024], index: 6, kind: input, shape index: {}]
  %s7 = inlined_call_operand.vmem [shape: f32[1024,32], index: 7, kind: input, shape index: {}]
  %s8 = inlined_call_operand.vmem [shape: f32[1,32], index: 8, kind: input, shape index: {}]
  %s9 = inlined_call_operand.vmem [shape: f32[8,128], index: 9, kind: input, shape index: {}]
  %s10 = inlined_call_operand.vmem [shape: f32[128,32], index: 10, kind: input, shape index: {}]
  %s11 = inlined_call_operand.vmem [shape: f32[1,32], index: 11, kind: input, shape index: {}]
  %s12 = inlined_call_operand.vmem [shape: f32[8,128], index: 12, kind: input, shape index: {}]
  %s13 = inlined_call_operand.vmem [shape: f32[128,32], index: 13, kind: input, shape index: {}]
  %s14 = inlined_call_operand.vmem [shape: f32[1,32], index: 14, kind: input, shape index: {}]
  %s15 = inlined_call_operand.vmem [shape: f32[8,384], index: 15, kind: input, shape index: {}]
  %s16 = inlined_call_operand.vmem [shape: f32[384,32], index: 16, kind: input, shape index: {}]
  %s17 = inlined_call_operand.vmem [shape: f32[1,32], index: 17, kind: input, shape index: {}]
  %s18 = inlined_call_operand.vmem [shape: f32[8,128], index: 18, kind: input, shape index: {}]
  %s19 = inlined_call_operand.vmem [shape: f32[128,32], index: 19, kind: input, shape index: {}]
  %s20 = inlined_call_operand.vmem [shape: f32[1,32], index: 20, kind: input, shape index: {}]
  %s21 = inlined_call_operand.vmem [shape: f32[8,6], index: 21, kind: input, shape index: {}]
  %s22 = inlined_call_operand.vmem [shape: f32[8,192], index: 22, kind: output, shape index: {0}]
  %s23 = inlined_call_operand.hbm [shape: f32[8,192], index: 23, kind: output, shape index: {1}]
  %24 = xla_tuple %s22, %s23
  %s25 = sld [smem:[#allocation0]]
  $region106: #{pmf_encoder_forward.1} parent=0
    _
  %s27 = ssub.s32 1, %s25
  %s28 = scalar_select 0, %s27, %s25
  $region1: #{pmf_encoder_forward.1} parent=0
    #allocation2 [shape = 'u8[8192]{0}', space=vmem, size = 0x2000, scoped, tag = 'output window, operand 1, single buffered']
    #allocation3 [shape = 's32[1]{0}', space=sflag, size = 0x4, scoped, tag = 'scoped memory for pmf_encoder_forward.1']
    %29 = vsyncpa [#allocation3], 0
    // Predicated region
    $region2: #{pmf_encoder_forward.1} parent=1 // pred_check
      _
    $region3: #{pmf_encoder_forward.1} parent=1 // pred_check_branch
      %31 = sbr.rel (0) target = $region5
    $region4: #{pmf_encoder_forward.1} parent=1 // pred_region
      _
    $region5: #{pmf_encoder_forward.1} parent=1 // pred_fallthru
      _
    // Predicated region
    $region6: #{pmf_encoder_forward.1} parent=1 // pred_check
      _
    $region7: #{pmf_encoder_forward.1} parent=1 // pred_check_branch
      %33 = sbr.rel (0) target = $region9
    $region8: #{pmf_encoder_forward.1} parent=1 // pred_region
      _
    $region9: #{pmf_encoder_forward.1} parent=1 // pred_fallthru
      _
    // Predicated region
    $region10: #{pmf_encoder_forward.1} parent=1 // pred_check
      _
    $region11: #{pmf_encoder_forward.1} parent=1 // pred_check_branch
      %35 = sbr.rel (0) target = $region13
    $region12: #{pmf_encoder_forward.1} parent=1 // pred_region
      _
    $region13: #{pmf_encoder_forward.1} parent=1 // pred_fallthru
      _
    // Predicated region
    $region14: #{pmf_encoder_forward.1} parent=1 // pred_check
      _
    $region15: #{pmf_encoder_forward.1} parent=1 // pred_check_branch
      %37 = sbr.rel (0) target = $region17
    $region16: #{pmf_encoder_forward.1} parent=1 // pred_region
      _
    $region17: #{pmf_encoder_forward.1} parent=1 // pred_fallthru
      _
    // Predicated region
    $region18: #{pmf_encoder_forward.1} parent=1 // pred_check
      _
    $region19: #{pmf_encoder_forward.1} parent=1 // pred_check_branch
      %39 = sbr.rel (0) target = $region21
    $region20: #{pmf_encoder_forward.1} parent=1 // pred_region
      _
    $region21: #{pmf_encoder_forward.1} parent=1 // pred_fallthru
      _
    // Predicated region
    $region22: #{pmf_encoder_forward.1} parent=1 // pred_check
      _
    $region23: #{pmf_encoder_forward.1} parent=1 // pred_check_branch
      %41 = sbr.rel (0) target = $region25
    $region24: #{pmf_encoder_forward.1} parent=1 // pred_region
      _
    $region25: #{pmf_encoder_forward.1} parent=1 // pred_fallthru
      _
    // Predicated region
    $region26: #{pmf_encoder_forward.1} parent=1 // pred_check
      _
    $region27: #{pmf_encoder_forward.1} parent=1 // pred_check_branch
      %43 = sbr.rel (0) target = $region29
    $region28: #{pmf_encoder_forward.1} parent=1 // pred_region
      _
    $region29: #{pmf_encoder_forward.1} parent=1 // pred_fallthru
      _
    // Predicated region
    $region30: #{pmf_encoder_forward.1} parent=1 // pred_check
      _
    $region31: #{pmf_encoder_forward.1} parent=1 // pred_check_branch
      %45 = sbr.rel (0) target = $region33
    $region32: #{pmf_encoder_forward.1} parent=1 // pred_region
      _
    $region33: #{pmf_encoder_forward.1} parent=1 // pred_fallthru
      _
    // Predicated region
    $region34: #{pmf_encoder_forward.1} parent=1 // pred_check
      _
    $region35: #{pmf_encoder_forward.1} parent=1 // pred_check_branch
      %47 = sbr.rel (0) target = $region37
    $region36: #{pmf_encoder_forward.1} parent=1 // pred_region
      _
    $region37: #{pmf_encoder_forward.1} parent=1 // pred_fallthru
      _
    // Predicated region
    $region38: #{pmf_encoder_forward.1} parent=1 // pred_check
      _
    $region39: #{pmf_encoder_forward.1} parent=1 // pred_check_branch
      %49 = sbr.rel (0) target = $region41
    $region40: #{pmf_encoder_forward.1} parent=1 // pred_region
      _
    $region41: #{pmf_encoder_forward.1} parent=1 // pred_fallthru
      _
    // Predicated region
    $region42: #{pmf_encoder_forward.1} parent=1 // pred_check
      _
    $region43: #{pmf_encoder_forward.1} parent=1 // pred_check_branch
      %51 = sbr.rel (0) target = $region45
    $region44: #{pmf_encoder_forward.1} parent=1 // pred_region
      _
    $region45: #{pmf_encoder_forward.1} parent=1 // pred_fallthru
      _
    // Predicated region
    $region46: #{pmf_encoder_forward.1} parent=1 // pred_check
      _
    $region47: #{pmf_encoder_forward.1} parent=1 // pred_check_branch
      %53 = sbr.rel (0) target = $region49
    $region48: #{pmf_encoder_forward.1} parent=1 // pred_region
      _
    $region49: #{pmf_encoder_forward.1} parent=1 // pred_fallthru
      _
    // Predicated region
    $region50: #{pmf_encoder_forward.1} parent=1 // pred_check
      _
    $region51: #{pmf_encoder_forward.1} parent=1 // pred_check_branch
      %55 = sbr.rel (0) target = $region53
    $region52: #{pmf_encoder_forward.1} parent=1 // pred_region
      _
    $region53: #{pmf_encoder_forward.1} parent=1 // pred_fallthru
      _
    // Predicated region
    $region54: #{pmf_encoder_forward.1} parent=1 // pred_check
      _
    $region55: #{pmf_encoder_forward.1} parent=1 // pred_check_branch
      %57 = sbr.rel (0) target = $region57
    $region56: #{pmf_encoder_forward.1} parent=1 // pred_region
      _
    $region57: #{pmf_encoder_forward.1} parent=1 // pred_fallthru
      _
    // Predicated region
    $region58: #{pmf_encoder_forward.1} parent=1 // pred_check
      _
    $region59: #{pmf_encoder_forward.1} parent=1 // pred_check_branch
      %59 = sbr.rel (0) target = $region61
    $region60: #{pmf_encoder_forward.1} parent=1 // pred_region
      _
    $region61: #{pmf_encoder_forward.1} parent=1 // pred_fallthru
      _
    // Predicated region
    $region62: #{pmf_encoder_forward.1} parent=1 // pred_check
      _
    $region63: #{pmf_encoder_forward.1} parent=1 // pred_check_branch
      %61 = sbr.rel (0) target = $region65
    $region64: #{pmf_encoder_forward.1} parent=1 // pred_region
      _
    $region65: #{pmf_encoder_forward.1} parent=1 // pred_fallthru
      _
    // Predicated region
    $region66: #{pmf_encoder_forward.1} parent=1 // pred_check
      _
    $region67: #{pmf_encoder_forward.1} parent=1 // pred_check_branch
      %63 = sbr.rel (0) target = $region69
    $region68: #{pmf_encoder_forward.1} parent=1 // pred_region
      _
    $region69: #{pmf_encoder_forward.1} parent=1 // pred_fallthru
      _
    // Predicated region
    $region70: #{pmf_encoder_forward.1} parent=1 // pred_check
      _
    $region71: #{pmf_encoder_forward.1} parent=1 // pred_check_branch
      %65 = sbr.rel (0) target = $region73
    $region72: #{pmf_encoder_forward.1} parent=1 // pred_region
      _
    $region73: #{pmf_encoder_forward.1} parent=1 // pred_fallthru
      _
    // Predicated region
    $region74: #{pmf_encoder_forward.1} parent=1 // pred_check
      _
    $region75: #{pmf_encoder_forward.1} parent=1 // pred_check_branch
      %67 = sbr.rel (0) target = $region77
    $region76: #{pmf_encoder_forward.1} parent=1 // pred_region
      _
    $region77: #{pmf_encoder_forward.1} parent=1 // pred_fallthru
      _
    // Predicated region
    $region78: #{pmf_encoder_forward.1} parent=1 // pred_check
      _
    $region79: #{pmf_encoder_forward.1} parent=1 // pred_check_branch
      %69 = sbr.rel (0) target = $region81
    $region80: #{pmf_encoder_forward.1} parent=1 // pred_region
      _
    $region81: #{pmf_encoder_forward.1} parent=1 // pred_fallthru
      _
    // Predicated region
    $region82: #{pmf_encoder_forward.1} parent=1 // pred_check
      _
    $region83: #{pmf_encoder_forward.1} parent=1 // pred_check_branch
      %71 = sbr.rel (0) target = $region85
    $region84: #{pmf_encoder_forward.1} parent=1 // pred_region
      _
    $region85: #{pmf_encoder_forward.1} parent=1 // pred_fallthru
      _
    // Predicated region
    $region86: #{pmf_encoder_forward.1} parent=1 // pred_check
      _
    $region87: #{pmf_encoder_forward.1} parent=1 // pred_check_branch
      %73 = sbr.rel (0) target = $region89
    $region88: #{pmf_encoder_forward.1} parent=1 // pred_region
      _
    $region89: #{pmf_encoder_forward.1} parent=1 // pred_fallthru
      _
    %v74 = vld [vmem:[%s1] sm:$0xff]
    %v75 = vld [vmem:[%s0] sm:$0xff]
    %v76 = vld [vmem:[%s2] sm:$0xff]
    %v77 = vld [vmem:[%s2 + $0x8] sm:$0xff]
    %v78 = vld [vmem:[%s2 + $0x10] sm:$0xff]
    %v79 = vld [vmem:[%s2 + $0x18] sm:$0xff]
    %vm80 = vcmask 261120
    %v82 = vsel %vm80, %v75, 0
    %84 = vmatpush.msra.mxu0 0.0
    %85 = vmatpush.msra.mxu0 0.0
    %86 = vmatpush.msra.mxu0 0.0
    %87 = vmatpush.msra.mxu0 0.0
    %88 = vmatpush.msra.mxu0 0.0
    %89 = vmatpush.msra.mxu0 0.0
    %90 = vmatpush.msra.mxu0 0.0
    %91 = vmatpush.msra.mxu0 0.0
    %92 = vmatpush.msra.mxu0 0.0
    %93 = vmatpush.msra.mxu0 0.0
    %94 = vmatpush.msra.mxu0 0.0
    %95 = vmatpush.msra.mxu0 0.0
    %96 = vmatpush.msra.mxu0 %v79
    %97 = vmatpush.msra.mxu0 %v78
    %98 = vmatpush.msra.mxu0 %v77
    %99 = vmatpush.msra.mxu0 %v76
    %100 = vmatmul.f32.gmra.mxu0 %v82
    %v101 = vpop.f32.mrf.mxu0
    %v102 = vadd.f32 0.0, %v101
    %103 = vdwg.mxu0
    %v104 = vld [vmem:[%s3] sm:$0x1]
    %v106 = vperm.slane %v104, 0
    %vm108 = vcmask 64512
    %v110 = vsel %vm108, %v74, 0
    %112 = vmatpush.msra.mxu0 0.0
    %113 = vmatpush.msra.mxu0 0.0
    %114 = vmatpush.msra.mxu0 0.0
    %115 = vmatpush.msra.mxu0 0.0
    %116 = vmatpush.msra.mxu0 0.0
    %117 = vmatpush.msra.mxu0 0.0
    %118 = vmatpush.msra.mxu0 0.0
    %119 = vmatpush.msra.mxu0 0.0
    %120 = vmatpush.msra.mxu0 0.0
    %121 = vmatpush.msra.mxu0 0.0
    %122 = vmatpush.msra.mxu0 0.0
    %123 = vmatpush.msra.mxu0 0.0
    %124 = vmatpush.msra.mxu0 0.0
    %125 = vmatpush.msra.mxu0 0.0
    %126 = vmatpush.msra.mxu0 0.0
    %127 = vmatpush.msra.mxu0 %v102
    %128 = vmatmul.f32.gmra.mxu0 %v110
    %v129 = vpop.f32.mrf.mxu0
    %v130 = vadd.f32 %v106, %v129
    %131 = vdwg.mxu0
    %v132 = vmax.f32 %v130, 0.0
    %v133 = vld [vmem:[%s4] sm:$0xff]
    %v134 = vld [vmem:[%s4 + $0x8] sm:$0xff]
    %v135 = vld [vmem:[%s4 + $0x10] sm:$0xff]
    %v136 = vld [vmem:[%s4 + $0x18] sm:$0xff]
    %v138 = vsel %vm80, %v132, 0
    %140 = vmatpush.msra.mxu0 0.0
    %141 = vmatpush.msra.mxu0 0.0
    %142 = vmatpush.msra.mxu0 0.0
    %143 = vmatpush.msra.mxu0 0.0
    %144 = vmatpush.msra.mxu0 0.0
    %145 = vmatpush.msra.mxu0 0.0
    %146 = vmatpush.msra.mxu0 0.0
    %147 = vmatpush.msra.mxu0 0.0
    %148 = vmatpush.msra.mxu0 0.0
    %149 = vmatpush.msra.mxu0 0.0
    %150 = vmatpush.msra.mxu0 0.0
    %151 = vmatpush.msra.mxu0 0.0
    %152 = vmatpush.msra.mxu0 %v136
    %153 = vmatpush.msra.mxu0 %v135
    %154 = vmatpush.msra.mxu0 %v134
    %155 = vmatpush.msra.mxu0 %v133
    %156 = vmatmul.f32.gmra.mxu0 %v138
    %v157 = vpop.f32.mrf.mxu0
    %v158 = vadd.f32 0.0, %v157
    %159 = vdwg.mxu0
    %v160 = vld [vmem:[%s5] sm:$0x1]
    %v162 = vperm.slane %v160, 0
    %164 = vmatpush.msra.mxu0 0.0
    %165 = vmatpush.msra.mxu0 0.0
    %166 = vmatpush.msra.mxu0 0.0
    %167 = vmatpush.msra.mxu0 0.0
    %168 = vmatpush.msra.mxu0 0.0
    %169 = vmatpush.msra.mxu0 0.0
    %170 = vmatpush.msra.mxu0 0.0
    %171 = vmatpush.msra.mxu0 0.0
    %172 = vmatpush.msra.mxu0 0.0
    %173 = vmatpush.msra.mxu0 0.0
    %174 = vmatpush.msra.mxu0 0.0
    %175 = vmatpush.msra.mxu0 0.0
    %176 = vmatpush.msra.mxu0 0.0
    %177 = vmatpush.msra.mxu0 0.0
    %178 = vmatpush.msra.mxu0 0.0
    %179 = vmatpush.msra.mxu0 %v158
    %180 = vmatmul.f32.gmra.mxu0 %v110
    %v181 = vpop.f32.mrf.mxu0
    %v182 = vadd.f32 %v162, %v181
    %183 = vdwg.mxu0
    %v184 = vld [vmem:[%s6] sm:$0xff]
    %v185 = vld [vmem:[%s6 + $0x8] sm:$0xff]
    %v186 = vld [vmem:[%s6 + $0x10] sm:$0xff]
    %v187 = vld [vmem:[%s6 + $0x18] sm:$0xff]
    %v188 = vld [vmem:[%s6 + $0x20] sm:$0xff]
    %v189 = vld [vmem:[%s6 + $0x28] sm:$0xff]
    %v190 = vld [vmem:[%s6 + $0x30] sm:$0xff]
    %v191 = vld [vmem:[%s6 + $0x38] sm:$0xff]
    %v192 = vld [vmem:[%s7] sm:$0xff]
    %v193 = vld [vmem:[%s7 + $0x8] sm:$0xff]
    %v194 = vld [vmem:[%s7 + $0x10] sm:$0xff]
    %v195 = vld [vmem:[%s7 + $0x18] sm:$0xff]
    %v196 = vld [vmem:[%s7 + $0x20] sm:$0xff]
    %v197 = vld [vmem:[%s7 + $0x28] sm:$0xff]
    %v198 = vld [vmem:[%s7 + $0x30] sm:$0xff]
    %v199 = vld [vmem:[%s7 + $0x38] sm:$0xff]
    %v200 = vld [vmem:[%s7 + $0x40] sm:$0xff]
    %v201 = vld [vmem:[%s7 + $0x48] sm:$0xff]
    %v202 = vld [vmem:[%s7 + $0x50] sm:$0xff]
    %v203 = vld [vmem:[%s7 + $0x58] sm:$0xff]
    %v204 = vld [vmem:[%s7 + $0x60] sm:$0xff]
    %v205 = vld [vmem:[%s7 + $0x68] sm:$0xff]
    %v206 = vld [vmem:[%s7 + $0x70] sm:$0xff]
    %v207 = vld [vmem:[%s7 + $0x78] sm:$0xff]
    %v208 = vld [vmem:[%s7 + $0x80] sm:$0xff]
    %v209 = vld [vmem:[%s7 + $0x88] sm:$0xff]
    %v210 = vld [vmem:[%s7 + $0x90] sm:$0xff]
    %v211 = vld [vmem:[%s7 + $0x98] sm:$0xff]
    %v212 = vld [vmem:[%s7 + $0xa0] sm:$0xff]
    %v213 = vld [vmem:[%s7 + $0xa8] sm:$0xff]
    %v214 = vld [vmem:[%s7 + $0xb0] sm:$0xff]
    %v215 = vld [vmem:[%s7 + $0xb8] sm:$0xff]
    %v216 = vld [vmem:[%s7 + $0xc0] sm:$0xff]
    %v217 = vld [vmem:[%s7 + $0xc8] sm:$0xff]
    %v218 = vld [vmem:[%s7 + $0xd0] sm:$0xff]
    %v219 = vld [vmem:[%s7 + $0xd8] sm:$0xff]
    %v220 = vld [vmem:[%s7 + $0xe0] sm:$0xff]
    %v221 = vld [vmem:[%s7 + $0xe8] sm:$0xff]
    %v222 = vld [vmem:[%s7 + $0xf0] sm:$0xff]
    %v223 = vld [vmem:[%s7 + $0xf8] sm:$0xff]
    %v224 = vld [vmem:[%s7 + $0x100] sm:$0xff]
    %v225 = vld [vmem:[%s7 + $0x108] sm:$0xff]
    %v226 = vld [vmem:[%s7 + $0x110] sm:$0xff]
    %v227 = vld [vmem:[%s7 + $0x118] sm:$0xff]
    %v228 = vld [vmem:[%s7 + $0x120] sm:$0xff]
    %v229 = vld [vmem:[%s7 + $0x128] sm:$0xff]
    %v230 = vld [vmem:[%s7 + $0x130] sm:$0xff]
    %v231 = vld [vmem:[%s7 + $0x138] sm:$0xff]
    %v232 = vld [vmem:[%s7 + $0x140] sm:$0xff]
    %v233 = vld [vmem:[%s7 + $0x148] sm:$0xff]
    %v234 = vld [vmem:[%s7 + $0x150] sm:$0xff]
    %v235 = vld [vmem:[%s7 + $0x158] sm:$0xff]
    %v236 = vld [vmem:[%s7 + $0x160] sm:$0xff]
    %v237 = vld [vmem:[%s7 + $0x168] sm:$0xff]
    %v238 = vld [vmem:[%s7 + $0x170] sm:$0xff]
    %v239 = vld [vmem:[%s7 + $0x178] sm:$0xff]
    %v240 = vld [vmem:[%s7 + $0x180] sm:$0xff]
    %v241 = vld [vmem:[%s7 + $0x188] sm:$0xff]
    %v242 = vld [vmem:[%s7 + $0x190] sm:$0xff]
    %v243 = vld [vmem:[%s7 + $0x198] sm:$0xff]
    %v244 = vld [vmem:[%s7 + $0x1a0] sm:$0xff]
    %v245 = vld [vmem:[%s7 + $0x1a8] sm:$0xff]
    %v246 = vld [vmem:[%s7 + $0x1b0] sm:$0xff]
    %v247 = vld [vmem:[%s7 + $0x1b8] sm:$0xff]
    %v248 = vld [vmem:[%s7 + $0x1c0] sm:$0xff]
    %v249 = vld [vmem:[%s7 + $0x1c8] sm:$0xff]
    %v250 = vld [vmem:[%s7 + $0x1d0] sm:$0xff]
    %v251 = vld [vmem:[%s7 + $0x1d8] sm:$0xff]
    %v252 = vld [vmem:[%s7 + $0x1e0] sm:$0xff]
    %v253 = vld [vmem:[%s7 + $0x1e8] sm:$0xff]
    %v254 = vld [vmem:[%s7 + $0x1f0] sm:$0xff]
    %v255 = vld [vmem:[%s7 + $0x1f8] sm:$0xff]
    %v256 = vld [vmem:[%s7 + $0x200] sm:$0xff]
    %v257 = vld [vmem:[%s7 + $0x208] sm:$0xff]
    %v258 = vld [vmem:[%s7 + $0x210] sm:$0xff]
    %v259 = vld [vmem:[%s7 + $0x218] sm:$0xff]
    %v260 = vld [vmem:[%s7 + $0x220] sm:$0xff]
    %v261 = vld [vmem:[%s7 + $0x228] sm:$0xff]
    %v262 = vld [vmem:[%s7 + $0x230] sm:$0xff]
    %v263 = vld [vmem:[%s7 + $0x238] sm:$0xff]
    %v264 = vld [vmem:[%s7 + $0x240] sm:$0xff]
    %v265 = vld [vmem:[%s7 + $0x248] sm:$0xff]
    %v266 = vld [vmem:[%s7 + $0x250] sm:$0xff]
    %v267 = vld [vmem:[%s7 + $0x258] sm:$0xff]
    %v268 = vld [vmem:[%s7 + $0x260] sm:$0xff]
    %v269 = vld [vmem:[%s7 + $0x268] sm:$0xff]
    %v270 = vld [vmem:[%s7 + $0x270] sm:$0xff]
    %v271 = vld [vmem:[%s7 + $0x278] sm:$0xff]
    %v272 = vld [vmem:[%s7 + $0x280] sm:$0xff]
    %v273 = vld [vmem:[%s7 + $0x288] sm:$0xff]
    %v274 = vld [vmem:[%s7 + $0x290] sm:$0xff]
    %v275 = vld [vmem:[%s7 + $0x298] sm:$0xff]
    %v276 = vld [vmem:[%s7 + $0x2a0] sm:$0xff]
    %v277 = vld [vmem:[%s7 + $0x2a8] sm:$0xff]
    %v278 = vld [vmem:[%s7 + $0x2b0] sm:$0xff]
    %v279 = vld [vmem:[%s7 + $0x2b8] sm:$0xff]
    %v280 = vld [vmem:[%s7 + $0x2c0] sm:$0xff]
    %v281 = vld [vmem:[%s7 + $0x2c8] sm:$0xff]
    %v282 = vld [vmem:[%s7 + $0x2d0] sm:$0xff]
    %v283 = vld [vmem:[%s7 + $0x2d8] sm:$0xff]
    %v284 = vld [vmem:[%s7 + $0x2e0] sm:$0xff]
    %v285 = vld [vmem:[%s7 + $0x2e8] sm:$0xff]
    %v286 = vld [vmem:[%s7 + $0x2f0] sm:$0xff]
    %v287 = vld [vmem:[%s7 + $0x2f8] sm:$0xff]
    %v288 = vld [vmem:[%s7 + $0x300] sm:$0xff]
    %v289 = vld [vmem:[%s7 + $0x308] sm:$0xff]
    %v290 = vld [vmem:[%s7 + $0x310] sm:$0xff]
    %v291 = vld [vmem:[%s7 + $0x318] sm:$0xff]
    %v292 = vld [vmem:[%s7 + $0x320] sm:$0xff]
    %v293 = vld [vmem:[%s7 + $0x328] sm:$0xff]
    %v294 = vld [vmem:[%s7 + $0x330] sm:$0xff]
    %v295 = vld [vmem:[%s7 + $0x338] sm:$0xff]
    %v296 = vld [vmem:[%s7 + $0x340] sm:$0xff]
    %v297 = vld [vmem:[%s7 + $0x348] sm:$0xff]
    %v298 = vld [vmem:[%s7 + $0x350] sm:$0xff]
    %v299 = vld [vmem:[%s7 + $0x358] sm:$0xff]
    %v300 = vld [vmem:[%s7 + $0x360] sm:$0xff]
    %v301 = vld [vmem:[%s7 + $0x368] sm:$0xff]
    %v302 = vld [vmem:[%s7 + $0x370] sm:$0xff]
    %v303 = vld [vmem:[%s7 + $0x378] sm:$0xff]
    %v304 = vld [vmem:[%s7 + $0x380] sm:$0xff]
    %v305 = vld [vmem:[%s7 + $0x388] sm:$0xff]
    %v306 = vld [vmem:[%s7 + $0x390] sm:$0xff]
    %v307 = vld [vmem:[%s7 + $0x398] sm:$0xff]
    %v308 = vld [vmem:[%s7 + $0x3a0] sm:$0xff]
    %v309 = vld [vmem:[%s7 + $0x3a8] sm:$0xff]
    %v310 = vld [vmem:[%s7 + $0x3b0] sm:$0xff]
    %v311 = vld [vmem:[%s7 + $0x3b8] sm:$0xff]
    %v312 = vld [vmem:[%s7 + $0x3c0] sm:$0xff]
    %v313 = vld [vmem:[%s7 + $0x3c8] sm:$0xff]
    %v314 = vld [vmem:[%s7 + $0x3d0] sm:$0xff]
    %v315 = vld [vmem:[%s7 + $0x3d8] sm:$0xff]
    %v316 = vld [vmem:[%s7 + $0x3e0] sm:$0xff]
    %v317 = vld [vmem:[%s7 + $0x3e8] sm:$0xff]
    %v318 = vld [vmem:[%s7 + $0x3f0] sm:$0xff]
    %v319 = vld [vmem:[%s7 + $0x3f8] sm:$0xff]
    %v320 = vld [vmem:[%s8] sm:$0x1]
    %v322 = vperm.slane %v320, 0
    %324 = vmatpush.msra.mxu0 %v207
    %325 = vmatpush.msra.mxu0 %v206
    %326 = vmatpush.msra.mxu0 %v205
    %327 = vmatpush.msra.mxu0 %v204
    %328 = vmatpush.msra.mxu0 %v203
    %329 = vmatpush.msra.mxu0 %v202
    %330 = vmatpush.msra.mxu0 %v201
    %331 = vmatpush.msra.mxu0 %v200
    %332 = vmatpush.msra.mxu0 %v199
    %333 = vmatpush.msra.mxu0 %v198
    %334 = vmatpush.msra.mxu0 %v197
    %335 = vmatpush.msra.mxu0 %v196
    %336 = vmatpush.msra.mxu0 %v195
    %337 = vmatpush.msra.mxu0 %v194
    %338 = vmatpush.msra.mxu0 %v193
    %339 = vmatpush.msra.mxu0 %v192
    %340 = vmatmul.f32.gmra.mxu0 %v184
    %v341 = vpop.f32.mrf.mxu0
    %v342 = vadd.f32 %v322, %v341
    %343 = vdwg.mxu0
    %344 = vmatpush.msra.mxu0 %v223
    %345 = vmatpush.msra.mxu0 %v222
    %346 = vmatpush.msra.mxu0 %v221
    %347 = vmatpush.msra.mxu0 %v220
    %348 = vmatpush.msra.mxu0 %v219
    %349 = vmatpush.msra.mxu0 %v218
    %350 = vmatpush.msra.mxu0 %v217
    %351 = vmatpush.msra.mxu0 %v216
    %352 = vmatpush.msra.mxu0 %v215
    %353 = vmatpush.msra.mxu0 %v214
    %354 = vmatpush.msra.mxu0 %v213
    %355 = vmatpush.msra.mxu0 %v212
    %356 = vmatpush.msra.mxu0 %v211
    %357 = vmatpush.msra.mxu0 %v210
    %358 = vmatpush.msra.mxu0 %v209
    %359 = vmatpush.msra.mxu0 %v208
    %360 = vmatmul.f32.gmra.mxu0 %v185
    %v361 = vpop.f32.mrf.mxu0
    %v362 = vadd.f32 %v342, %v361
    %363 = vdwg.mxu0
    %364 = vmatpush.msra.mxu0 %v239
    %365 = vmatpush.msra.mxu0 %v238
    %366 = vmatpush.msra.mxu0 %v237
    %367 = vmatpush.msra.mxu0 %v236
    %368 = vmatpush.msra.mxu0 %v235
    %369 = vmatpush.msra.mxu0 %v234
    %370 = vmatpush.msra.mxu0 %v233
    %371 = vmatpush.msra.mxu0 %v232
    %372 = vmatpush.msra.mxu0 %v231
    %373 = vmatpush.msra.mxu0 %v230
    %374 = vmatpush.msra.mxu0 %v229
    %375 = vmatpush.msra.mxu0 %v228
    %376 = vmatpush.msra.mxu0 %v227
    %377 = vmatpush.msra.mxu0 %v226
    %378 = vmatpush.msra.mxu0 %v225
    %379 = vmatpush.msra.mxu0 %v224
    %380 = vmatmul.f32.gmra.mxu0 %v186
    %v381 = vpop.f32.mrf.mxu0
    %v382 = vadd.f32 %v362, %v381
    %383 = vdwg.mxu0
    %384 = vmatpush.msra.mxu0 %v255
    %385 = vmatpush.msra.mxu0 %v254
    %386 = vmatpush.msra.mxu0 %v253
    %387 = vmatpush.msra.mxu0 %v252
    %388 = vmatpush.msra.mxu0 %v251
    %389 = vmatpush.msra.mxu0 %v250
    %390 = vmatpush.msra.mxu0 %v249
    %391 = vmatpush.msra.mxu0 %v248
    %392 = vmatpush.msra.mxu0 %v247
    %393 = vmatpush.msra.mxu0 %v246
    %394 = vmatpush.msra.mxu0 %v245
    %395 = vmatpush.msra.mxu0 %v244
    %396 = vmatpush.msra.mxu0 %v243
    %397 = vmatpush.msra.mxu0 %v242
    %398 = vmatpush.msra.mxu0 %v241
    %399 = vmatpush.msra.mxu0 %v240
    %400 = vmatmul.f32.gmra.mxu0 %v187
    %v401 = vpop.f32.mrf.mxu0
    %v402 = vadd.f32 %v382, %v401
    %403 = vdwg.mxu0
    %404 = vmatpush.msra.mxu0 %v271
    %405 = vmatpush.msra.mxu0 %v270
    %406 = vmatpush.msra.mxu0 %v269
    %407 = vmatpush.msra.mxu0 %v268
    %408 = vmatpush.msra.mxu0 %v267
    %409 = vmatpush.msra.mxu0 %v266
    %410 = vmatpush.msra.mxu0 %v265
    %411 = vmatpush.msra.mxu0 %v264
    %412 = vmatpush.msra.mxu0 %v263
    %413 = vmatpush.msra.mxu0 %v262
    %414 = vmatpush.msra.mxu0 %v261
    %415 = vmatpush.msra.mxu0 %v260
    %416 = vmatpush.msra.mxu0 %v259
    %417 = vmatpush.msra.mxu0 %v258
    %418 = vmatpush.msra.mxu0 %v257
    %419 = vmatpush.msra.mxu0 %v256
    %420 = vmatmul.f32.gmra.mxu0 %v188
    %v421 = vpop.f32.mrf.mxu0
    %v422 = vadd.f32 %v402, %v421
    %423 = vdwg.mxu0
    %424 = vmatpush.msra.mxu0 %v287
    %425 = vmatpush.msra.mxu0 %v286
    %426 = vmatpush.msra.mxu0 %v285
    %427 = vmatpush.msra.mxu0 %v284
    %428 = vmatpush.msra.mxu0 %v283
    %429 = vmatpush.msra.mxu0 %v282
    %430 = vmatpush.msra.mxu0 %v281
    %431 = vmatpush.msra.mxu0 %v280
    %432 = vmatpush.msra.mxu0 %v279
    %433 = vmatpush.msra.mxu0 %v278
    %434 = vmatpush.msra.mxu0 %v277
    %435 = vmatpush.msra.mxu0 %v276
    %436 = vmatpush.msra.mxu0 %v275
    %437 = vmatpush.msra.mxu0 %v274
    %438 = vmatpush.msra.mxu0 %v273
    %439 = vmatpush.msra.mxu0 %v272
    %440 = vmatmul.f32.gmra.mxu0 %v189
    %v441 = vpop.f32.mrf.mxu0
    %v442 = vadd.f32 %v422, %v441
    %443 = vdwg.mxu0
    %444 = vmatpush.msra.mxu0 %v303
    %445 = vmatpush.msra.mxu0 %v302
    %446 = vmatpush.msra.mxu0 %v301
    %447 = vmatpush.msra.mxu0 %v300
    %448 = vmatpush.msra.mxu0 %v299
    %449 = vmatpush.msra.mxu0 %v298
    %450 = vmatpush.msra.mxu0 %v297
    %451 = vmatpush.msra.mxu0 %v296
    %452 = vmatpush.msra.mxu0 %v295
    %453 = vmatpush.msra.mxu0 %v294
    %454 = vmatpush.msra.mxu0 %v293
    %455 = vmatpush.msra.mxu0 %v292
    %456 = vmatpush.msra.mxu0 %v291
    %457 = vmatpush.msra.mxu0 %v290
    %458 = vmatpush.msra.mxu0 %v289
    %459 = vmatpush.msra.mxu0 %v288
    %460 = vmatmul.f32.gmra.mxu0 %v190
    %v461 = vpop.f32.mrf.mxu0
    %v462 = vadd.f32 %v442, %v461
    %463 = vdwg.mxu0
    %464 = vmatpush.msra.mxu0 %v319
    %465 = vmatpush.msra.mxu0 %v318
    %466 = vmatpush.msra.mxu0 %v317
    %467 = vmatpush.msra.mxu0 %v316
    %468 = vmatpush.msra.mxu0 %v315
    %469 = vmatpush.msra.mxu0 %v314
    %470 = vmatpush.msra.mxu0 %v313
    %471 = vmatpush.msra.mxu0 %v312
    %472 = vmatpush.msra.mxu0 %v311
    %473 = vmatpush.msra.mxu0 %v310
    %474 = vmatpush.msra.mxu0 %v309
    %475 = vmatpush.msra.mxu0 %v308
    %476 = vmatpush.msra.mxu0 %v307
    %477 = vmatpush.msra.mxu0 %v306
    %478 = vmatpush.msra.mxu0 %v305
    %479 = vmatpush.msra.mxu0 %v304
    %480 = vmatmul.f32.gmra.mxu0 %v191
    %v481 = vpop.f32.mrf.mxu0
    %v482 = vadd.f32 %v462, %v481
    %483 = vdwg.mxu0
    %v484 = vld [vmem:[%s9] sm:$0xff]
    %v485 = vld [vmem:[%s10] sm:$0xff]
    %v486 = vld [vmem:[%s10 + $0x8] sm:$0xff]
    %v487 = vld [vmem:[%s10 + $0x10] sm:$0xff]
    %v488 = vld [vmem:[%s10 + $0x18] sm:$0xff]
    %v489 = vld [vmem:[%s10 + $0x20] sm:$0xff]
    %v490 = vld [vmem:[%s10 + $0x28] sm:$0xff]
    %v491 = vld [vmem:[%s10 + $0x30] sm:$0xff]
    %v492 = vld [vmem:[%s10 + $0x38] sm:$0xff]
    %v493 = vld [vmem:[%s10 + $0x40] sm:$0xff]
    %v494 = vld [vmem:[%s10 + $0x48] sm:$0xff]
    %v495 = vld [vmem:[%s10 + $0x50] sm:$0xff]
    %v496 = vld [vmem:[%s10 + $0x58] sm:$0xff]
    %v497 = vld [vmem:[%s10 + $0x60] sm:$0xff]
    %v498 = vld [vmem:[%s10 + $0x68] sm:$0xff]
    %v499 = vld [vmem:[%s10 + $0x70] sm:$0xff]
    %v500 = vld [vmem:[%s10 + $0x78] sm:$0xff]
    %v501 = vld [vmem:[%s11] sm:$0x1]
    %v503 = vperm.slane %v501, 0
    %505 = vmatpush.msra.mxu0 %v500
    %506 = vmatpush.msra.mxu0 %v499
    %507 = vmatpush.msra.mxu0 %v498
    %508 = vmatpush.msra.mxu0 %v497
    %509 = vmatpush.msra.mxu0 %v496
    %510 = vmatpush.msra.mxu0 %v495
    %511 = vmatpush.msra.mxu0 %v494
    %512 = vmatpush.msra.mxu0 %v493
    %513 = vmatpush.msra.mxu0 %v492
    %514 = vmatpush.msra.mxu0 %v491
    %515 = vmatpush.msra.mxu0 %v490
    %516 = vmatpush.msra.mxu0 %v489
    %517 = vmatpush.msra.mxu0 %v488
    %518 = vmatpush.msra.mxu0 %v487
    %519 = vmatpush.msra.mxu0 %v486
    %520 = vmatpush.msra.mxu0 %v485
    %521 = vmatmul.f32.gmra.mxu0 %v484
    %v522 = vpop.f32.mrf.mxu0
    %v523 = vadd.f32 %v503, %v522
    %524 = vdwg.mxu0
    %v525 = vld [vmem:[%s12] sm:$0xff]
    %v526 = vld [vmem:[%s13] sm:$0xff]
    %v527 = vld [vmem:[%s13 + $0x8] sm:$0xff]
    %v528 = vld [vmem:[%s13 + $0x10] sm:$0xff]
    %v529 = vld [vmem:[%s13 + $0x18] sm:$0xff]
    %v530 = vld [vmem:[%s13 + $0x20] sm:$0xff]
    %v531 = vld [vmem:[%s13 + $0x28] sm:$0xff]
    %v532 = vld [vmem:[%s13 + $0x30] sm:$0xff]
    %v533 = vld [vmem:[%s13 + $0x38] sm:$0xff]
    %v534 = vld [vmem:[%s13 + $0x40] sm:$0xff]
    %v535 = vld [vmem:[%s13 + $0x48] sm:$0xff]
    %v536 = vld [vmem:[%s13 + $0x50] sm:$0xff]
    %v537 = vld [vmem:[%s13 + $0x58] sm:$0xff]
    %v538 = vld [vmem:[%s13 + $0x60] sm:$0xff]
    %v539 = vld [vmem:[%s13 + $0x68] sm:$0xff]
    %v540 = vld [vmem:[%s13 + $0x70] sm:$0xff]
    %v541 = vld [vmem:[%s13 + $0x78] sm:$0xff]
    %v542 = vld [vmem:[%s14] sm:$0x1]
    %v544 = vperm.slane %v542, 0
    %546 = vmatpush.msra.mxu0 %v541
    %547 = vmatpush.msra.mxu0 %v540
    %548 = vmatpush.msra.mxu0 %v539
    %549 = vmatpush.msra.mxu0 %v538
    %550 = vmatpush.msra.mxu0 %v537
    %551 = vmatpush.msra.mxu0 %v536
    %552 = vmatpush.msra.mxu0 %v535
    %553 = vmatpush.msra.mxu0 %v534
    %554 = vmatpush.msra.mxu0 %v533
    %555 = vmatpush.msra.mxu0 %v532
    %556 = vmatpush.msra.mxu0 %v531
    %557 = vmatpush.msra.mxu0 %v530
    %558 = vmatpush.msra.mxu0 %v529
    %559 = vmatpush.msra.mxu0 %v528
    %560 = vmatpush.msra.mxu0 %v527
    %561 = vmatpush.msra.mxu0 %v526
    %562 = vmatmul.f32.gmra.mxu0 %v525
    %v563 = vpop.f32.mrf.mxu0
    %v564 = vadd.f32 %v544, %v563
    %565 = vdwg.mxu0
    %v566 = vld [vmem:[%s15] sm:$0xff]
    %v567 = vld [vmem:[%s15 + $0x8] sm:$0xff]
    %v568 = vld [vmem:[%s15 + $0x10] sm:$0xff]
    %v569 = vld [vmem:[%s16] sm:$0xff]
    %v570 = vld [vmem:[%s16 + $0x8] sm:$0xff]
    %v571 = vld [vmem:[%s16 + $0x10] sm:$0xff]
    %v572 = vld [vmem:[%s16 + $0x18] sm:$0xff]
    %v573 = vld [vmem:[%s16 + $0x20] sm:$0xff]
    %v574 = vld [vmem:[%s16 + $0x28] sm:$0xff]
    %v575 = vld [vmem:[%s16 + $0x30] sm:$0xff]
    %v576 = vld [vmem:[%s16 + $0x38] sm:$0xff]
    %v577 = vld [vmem:[%s16 + $0x40] sm:$0xff]
    %v578 = vld [vmem:[%s16 + $0x48] sm:$0xff]
    %v579 = vld [vmem:[%s16 + $0x50] sm:$0xff]
    %v580 = vld [vmem:[%s16 + $0x58] sm:$0xff]
    %v581 = vld [vmem:[%s16 + $0x60] sm:$0xff]
    %v582 = vld [vmem:[%s16 + $0x68] sm:$0xff]
    %v583 = vld [vmem:[%s16 + $0x70] sm:$0xff]
    %v584 = vld [vmem:[%s16 + $0x78] sm:$0xff]
    %v585 = vld [vmem:[%s16 + $0x80] sm:$0xff]
    %v586 = vld [vmem:[%s16 + $0x88] sm:$0xff]
    %v587 = vld [vmem:[%s16 + $0x90] sm:$0xff]
    %v588 = vld [vmem:[%s16 + $0x98] sm:$0xff]
    %v589 = vld [vmem:[%s16 + $0xa0] sm:$0xff]
    %v590 = vld [vmem:[%s16 + $0xa8] sm:$0xff]
    %v591 = vld [vmem:[%s16 + $0xb0] sm:$0xff]
    %v592 = vld [vmem:[%s16 + $0xb8] sm:$0xff]
    %v593 = vld [vmem:[%s16 + $0xc0] sm:$0xff]
    %v594 = vld [vmem:[%s16 + $0xc8] sm:$0xff]
    %v595 = vld [vmem:[%s16 + $0xd0] sm:$0xff]
    %v596 = vld [vmem:[%s16 + $0xd8] sm:$0xff]
    %v597 = vld [vmem:[%s16 + $0xe0] sm:$0xff]
    %v598 = vld [vmem:[%s16 + $0xe8] sm:$0xff]
    %v599 = vld [vmem:[%s16 + $0xf0] sm:$0xff]
    %v600 = vld [vmem:[%s16 + $0xf8] sm:$0xff]
    %v601 = vld [vmem:[%s16 + $0x100] sm:$0xff]
    %v602 = vld [vmem:[%s16 + $0x108] sm:$0xff]
    %v603 = vld [vmem:[%s16 + $0x110] sm:$0xff]
    %v604 = vld [vmem:[%s16 + $0x118] sm:$0xff]
    %v605 = vld [vmem:[%s16 + $0x120] sm:$0xff]
    %v606 = vld [vmem:[%s16 + $0x128] sm:$0xff]
    %v607 = vld [vmem:[%s16 + $0x130] sm:$0xff]
    %v608 = vld [vmem:[%s16 + $0x138] sm:$0xff]
    %v609 = vld [vmem:[%s16 + $0x140] sm:$0xff]
    %v610 = vld [vmem:[%s16 + $0x148] sm:$0xff]
    %v611 = vld [vmem:[%s16 + $0x150] sm:$0xff]
    %v612 = vld [vmem:[%s16 + $0x158] sm:$0xff]
    %v613 = vld [vmem:[%s16 + $0x160] sm:$0xff]
    %v614 = vld [vmem:[%s16 + $0x168] sm:$0xff]
    %v615 = vld [vmem:[%s16 + $0x170] sm:$0xff]
    %v616 = vld [vmem:[%s16 + $0x178] sm:$0xff]
    %v617 = vld [vmem:[%s17] sm:$0x1]
    %v619 = vperm.slane %v617, 0
    %621 = vmatpush.msra.mxu0 %v584
    %622 = vmatpush.msra.mxu0 %v583
    %623 = vmatpush.msra.mxu0 %v582
    %624 = vmatpush.msra.mxu0 %v581
    %625 = vmatpush.msra.mxu0 %v580
    %626 = vmatpush.msra.mxu0 %v579
    %627 = vmatpush.msra.mxu0 %v578
    %628 = vmatpush.msra.mxu0 %v577
    %629 = vmatpush.msra.mxu0 %v576
    %630 = vmatpush.msra.mxu0 %v575
    %631 = vmatpush.msra.mxu0 %v574
    %632 = vmatpush.msra.mxu0 %v573
    %633 = vmatpush.msra.mxu0 %v572
    %634 = vmatpush.msra.mxu0 %v571
    %635 = vmatpush.msra.mxu0 %v570
    %636 = vmatpush.msra.mxu0 %v569
    %637 = vmatmul.f32.gmra.mxu0 %v566
    %v638 = vpop.f32.mrf.mxu0
    %v639 = vadd.f32 %v619, %v638
    %640 = vdwg.mxu0
    %641 = vmatpush.msra.mxu0 %v600
    %642 = vmatpush.msra.mxu0 %v599
    %643 = vmatpush.msra.mxu0 %v598
    %644 = vmatpush.msra.mxu0 %v597
    %645 = vmatpush.msra.mxu0 %v596
    %646 = vmatpush.msra.mxu0 %v595
    %647 = vmatpush.msra.mxu0 %v594
    %648 = vmatpush.msra.mxu0 %v593
    %649 = vmatpush.msra.mxu0 %v592
    %650 = vmatpush.msra.mxu0 %v591
    %651 = vmatpush.msra.mxu0 %v590
    %652 = vmatpush.msra.mxu0 %v589
    %653 = vmatpush.msra.mxu0 %v588
    %654 = vmatpush.msra.mxu0 %v587
    %655 = vmatpush.msra.mxu0 %v586
    %656 = vmatpush.msra.mxu0 %v585
    %657 = vmatmul.f32.gmra.mxu0 %v567
    %v658 = vpop.f32.mrf.mxu0
    %v659 = vadd.f32 %v639, %v658
    %660 = vdwg.mxu0
    %661 = vmatpush.msra.mxu0 %v616
    %662 = vmatpush.msra.mxu0 %v615
    %663 = vmatpush.msra.mxu0 %v614
    %664 = vmatpush.msra.mxu0 %v613
    %665 = vmatpush.msra.mxu0 %v612
    %666 = vmatpush.msra.mxu0 %v611
    %667 = vmatpush.msra.mxu0 %v610
    %668 = vmatpush.msra.mxu0 %v609
    %669 = vmatpush.msra.mxu0 %v608
    %670 = vmatpush.msra.mxu0 %v607
    %671 = vmatpush.msra.mxu0 %v606
    %672 = vmatpush.msra.mxu0 %v605
    %673 = vmatpush.msra.mxu0 %v604
    %674 = vmatpush.msra.mxu0 %v603
    %675 = vmatpush.msra.mxu0 %v602
    %676 = vmatpush.msra.mxu0 %v601
    %677 = vmatmul.f32.gmra.mxu0 %v568
    %v678 = vpop.f32.mrf.mxu0
    %v679 = vadd.f32 %v659, %v678
    %680 = vdwg.mxu0
    %v681 = vld [vmem:[%s18] sm:$0xff]
    %v682 = vld [vmem:[%s19] sm:$0xff]
    %v683 = vld [vmem:[%s19 + $0x8] sm:$0xff]
    %v684 = vld [vmem:[%s19 + $0x10] sm:$0xff]
    %v685 = vld [vmem:[%s19 + $0x18] sm:$0xff]
    %v686 = vld [vmem:[%s19 + $0x20] sm:$0xff]
    %v687 = vld [vmem:[%s19 + $0x28] sm:$0xff]
    %v688 = vld [vmem:[%s19 + $0x30] sm:$0xff]
    %v689 = vld [vmem:[%s19 + $0x38] sm:$0xff]
    %v690 = vld [vmem:[%s19 + $0x40] sm:$0xff]
    %v691 = vld [vmem:[%s19 + $0x48] sm:$0xff]
    %v692 = vld [vmem:[%s19 + $0x50] sm:$0xff]
    %v693 = vld [vmem:[%s19 + $0x58] sm:$0xff]
    %v694 = vld [vmem:[%s19 + $0x60] sm:$0xff]
    %v695 = vld [vmem:[%s19 + $0x68] sm:$0xff]
    %v696 = vld [vmem:[%s19 + $0x70] sm:$0xff]
    %v697 = vld [vmem:[%s19 + $0x78] sm:$0xff]
    %v698 = vld [vmem:[%s20] sm:$0x1]
    %v700 = vperm.slane %v698, 0
    %702 = vmatpush.msra.mxu0 %v697
    %703 = vmatpush.msra.mxu0 %v696
    %704 = vmatpush.msra.mxu0 %v695
    %705 = vmatpush.msra.mxu0 %v694
    %706 = vmatpush.msra.mxu0 %v693
    %707 = vmatpush.msra.mxu0 %v692
    %708 = vmatpush.msra.mxu0 %v691
    %709 = vmatpush.msra.mxu0 %v690
    %710 = vmatpush.msra.mxu0 %v689
    %711 = vmatpush.msra.mxu0 %v688
    %712 = vmatpush.msra.mxu0 %v687
    %713 = vmatpush.msra.mxu0 %v686
    %714 = vmatpush.msra.mxu0 %v685
    %715 = vmatpush.msra.mxu0 %v684
    %716 = vmatpush.msra.mxu0 %v683
    %717 = vmatpush.msra.mxu0 %v682
    %718 = vmatmul.f32.gmra.mxu0 %v681
    %v719 = vpop.f32.mrf.mxu0
    %v720 = vadd.f32 %v700, %v719
    %721 = vdwg.mxu0
    %v722 = vld [vmem:[%s21] sm:$0xff]
    %723 = vst.msk [vmem:[%s22] sm:$0xff] %vm80, %v182
    %725 = vset.pattern.permute.xlu0 0
    %726 = vperm.xlu0 %725, %v722
    %v727 = vpop.permute.xlu0 %726
    %v729 = vmul.f32 %v182, %v727
    %v730 = vmul.f32 %v729, %v729
    %v731 = vsel %vm80, %v730, 0.0
    %732 = vadd.xlane.f32.xlu0 %v731
    %v733 = vpop.xlane.xlu0 %732
    %v734 = vmax.f32 %v733, 1e-24
    %v735 = vrsqrt.pop %v734
    %v736 = vmul.f32 %v735, %v734
    %v737 = vmul.f32 %v736, %v735
    %v738 = vmul.f32 0.5, %v737
    %v739 = vsub.f32 1.5, %v738
    %v740 = vmul.f32 %v735, %v739
    %vm741 = vweird.f32 %v734
    %vm742 = vweird.f32 %v735
    %vm743 = vmor %vm741, %vm742
    %v744 = vsel %vm743, %v735, %v740
    %v745 = vmul.f32 %v729, %v744
    %746 = vst.msk [vmem:[#allocation2] sm:$0xff] %vm80, %v745
    %748 = vrot.lane.b32.xlu0 %v482, 32
    %v749 = vpop.permute.xlu0 %748
    %vm751 = vcmask 523520
    %752 = vst.msk [vmem:[%s22] sm:$0xff] %vm751, %v749
    %753 = vset.pattern.permute.xlu0 1
    %754 = vperm.xlu0 %753, %v722
    %v755 = vpop.permute.xlu0 %754
    %v757 = vmul.f32 %v482, %v755
    %v758 = vmul.f32 %v757, %v757
    %v759 = vsel %vm80, %v758, 0.0
    %760 = vadd.xlane.f32.xlu0 %v759
    %v761 = vpop.xlane.xlu0 %760
    %v762 = vmax.f32 %v761, 1e-24
    %v763 = vrsqrt.pop %v762
    %v764 = vmul.f32 %v763, %v762
    %v765 = vmul.f32 %v764, %v763
    %v766 = vmul.f32 0.5, %v765
    %v767 = vsub.f32 1.5, %v766
    %v768 = vmul.f32 %v763, %v767
    %vm769 = vweird.f32 %v762
    %vm770 = vweird.f32 %v763
    %vm771 = vmor %vm769, %vm770
    %v772 = vsel %vm771, %v763, %v768
    %v773 = vmul.f32 %v757, %v772
    %775 = vrot.lane.b32.xlu0 %v773, 32
    %v776 = vpop.permute.xlu0 %775
    %778 = vst.msk [vmem:[#allocation2] sm:$0xff] %vm751, %v776
    %780 = vrot.lane.b32.xlu0 %v523, 64
    %v781 = vpop.permute.xlu0 %780
    %vm783 = vcmask 785920
    %784 = vst.msk [vmem:[%s22] sm:$0xff] %vm783, %v781
    %785 = vset.pattern.permute.xlu0 2
    %786 = vperm.xlu0 %785, %v722
    %v787 = vpop.permute.xlu0 %786
    %v789 = vmul.f32 %v523, %v787
    %v790 = vmul.f32 %v789, %v789
    %v791 = vsel %vm80, %v790, 0.0
    %792 = vadd.xlane.f32.xlu0 %v791
    %v793 = vpop.xlane.xlu0 %792
    %v794 = vmax.f32 %v793, 1e-24
    %v795 = vrsqrt.pop %v794
    %v796 = vmul.f32 %v795, %v794
    %v797 = vmul.f32 %v796, %v795
    %v798 = vmul.f32 0.5, %v797
    %v799 = vsub.f32 1.5, %v798
    %v800 = vmul.f32 %v795, %v799
    %vm801 = vweird.f32 %v794
    %vm802 = vweird.f32 %v795
    %vm803 = vmor %vm801, %vm802
    %v804 = vsel %vm803, %v795, %v800
    %v805 = vmul.f32 %v789, %v804
    %807 = vrot.lane.b32.xlu0 %v805, 64
    %v808 = vpop.permute.xlu0 %807
    %810 = vst.msk [vmem:[#allocation2] sm:$0xff] %vm783, %v808
    %812 = vrot.lane.b32.xlu0 %v564, 96
    %v813 = vpop.permute.xlu0 %812
    %vm815 = vcmask 1048320
    %816 = vst.msk [vmem:[%s22] sm:$0xff] %vm815, %v813
    %817 = vset.pattern.permute.xlu0 3
    %818 = vperm.xlu0 %817, %v722
    %v819 = vpop.permute.xlu0 %818
    %v821 = vmul.f32 %v564, %v819
    %v822 = vmul.f32 %v821, %v821
    %v823 = vsel %vm80, %v822, 0.0
    %824 = vadd.xlane.f32.xlu0 %v823
    %v825 = vpop.xlane.xlu0 %824
    %v826 = vmax.f32 %v825, 1e-24
    %v827 = vrsqrt.pop %v826
    %v828 = vmul.f32 %v827, %v826
    %v829 = vmul.f32 %v828, %v827
    %v830 = vmul.f32 0.5, %v829
    %v831 = vsub.f32 1.5, %v830
    %v832 = vmul.f32 %v827, %v831
    %vm833 = vweird.f32 %v826
    %vm834 = vweird.f32 %v827
    %vm835 = vmor %vm833, %vm834
    %v836 = vsel %vm835, %v827, %v832
    %v837 = vmul.f32 %v821, %v836
    %839 = vrot.lane.b32.xlu0 %v837, 96
    %v840 = vpop.permute.xlu0 %839
    %842 = vst.msk [vmem:[#allocation2] sm:$0xff] %vm815, %v840
    %843 = vst.msk [vmem:[%s22 + $0x8] sm:$0xff] %vm80, %v679
    %844 = vset.pattern.permute.xlu0 4
    %845 = vperm.xlu0 %844, %v722
    %v846 = vpop.permute.xlu0 %845
    %v848 = vmul.f32 %v679, %v846
    %v849 = vmul.f32 %v848, %v848
    %v850 = vsel %vm80, %v849, 0.0
    %851 = vadd.xlane.f32.xlu0 %v850
    %v852 = vpop.xlane.xlu0 %851
    %v853 = vmax.f32 %v852, 1e-24
    %v854 = vrsqrt.pop %v853
    %v855 = vmul.f32 %v854, %v853
    %v856 = vmul.f32 %v855, %v854
    %v857 = vmul.f32 0.5, %v856
    %v858 = vsub.f32 1.5, %v857
    %v859 = vmul.f32 %v854, %v858
    %vm860 = vweird.f32 %v853
    %vm861 = vweird.f32 %v854
    %vm862 = vmor %vm860, %vm861
    %v863 = vsel %vm862, %v854, %v859
    %v864 = vmul.f32 %v848, %v863
    %865 = vst.msk [vmem:[#allocation2 + $0x8] sm:$0xff] %vm80, %v864
    %867 = vrot.lane.b32.xlu0 %v720, 32
    %v868 = vpop.permute.xlu0 %867
    %870 = vst.msk [vmem:[%s22 + $0x8] sm:$0xff] %vm751, %v868
    %871 = vset.pattern.permute.xlu0 5
    %872 = vperm.xlu0 %871, %v722
    %v873 = vpop.permute.xlu0 %872
    %v875 = vmul.f32 %v720, %v873
    %v876 = vmul.f32 %v875, %v875
    %v877 = vsel %vm80, %v876, 0.0
    %878 = vadd.xlane.f32.xlu0 %v877
    %v879 = vpop.xlane.xlu0 %878
    %v880 = vmax.f32 %v879, 1e-24
    %v881 = vrsqrt.pop %v880
    %v882 = vmul.f32 %v881, %v880
    %v883 = vmul.f32 %v882, %v881
    %v884 = vmul.f32 0.5, %v883
    %v885 = vsub.f32 1.5, %v884
    %v886 = vmul.f32 %v881, %v885
    %vm887 = vweird.f32 %v880
    %vm888 = vweird.f32 %v881
    %vm889 = vmor %vm887, %vm888
    %v890 = vsel %vm889, %v881, %v886
    %v891 = vmul.f32 %v875, %v890
    %893 = vrot.lane.b32.xlu0 %v891, 32
    %v894 = vpop.permute.xlu0 %893
    %896 = vst.msk [vmem:[#allocation2 + $0x8] sm:$0xff] %vm751, %v894
    // Predicated region
    $region90: #{pmf_encoder_forward.1} parent=1 // pred_check
      _
    $region91: #{pmf_encoder_forward.1} parent=1 // pred_check_branch
      %898 = sbr.rel (0) target = $region93
    $region92: #{pmf_encoder_forward.1} parent=1 // pred_region
      _
    $region93: #{pmf_encoder_forward.1} parent=1 // pred_fallthru
      _
    // Predicated region
    $region94: #{pmf_encoder_forward.1} parent=1 // pred_check
      _
    $region95: #{pmf_encoder_forward.1} parent=1 // pred_check_branch
      %900 = sbr.rel (0) target = $region97
    $region96: #{pmf_encoder_forward.1} parent=1 // pred_region
      %902 = vsyncadd [#allocation3], 0
      %s904 = sshll.u32 [#allocation2], 4
      %s905 = int_to_ptr.vmem [resolvable:$true] %s904
      %s906 = sshll.u32 %s23, 4
      %s907 = int_to_ptr.hbm [resolvable:$true] %s906
      %909 = dma.vmem_to_hbm [thread:$0]  %s905, 256, %s907, [#allocation3]
    $region97: #{pmf_encoder_forward.1} parent=1 // pred_fallthru
      _
    // Predicated region
    $region98: #{pmf_encoder_forward.1} parent=1 // pred_check
      _
    $region99: #{pmf_encoder_forward.1} parent=1 // pred_check_branch
      %911 = sbr.rel (0) target = $region101
    $region100: #{pmf_encoder_forward.1} parent=1 // pred_region
      _
    $region101: #{pmf_encoder_forward.1} parent=1 // pred_fallthru
      _
    // Predicated region
    $region102: #{pmf_encoder_forward.1} parent=1 // pred_check
      _
    $region103: #{pmf_encoder_forward.1} parent=1 // pred_check_branch
      %913 = sbr.rel (0) target = $region105
    $region104: #{pmf_encoder_forward.1} parent=1 // pred_region
      %915 = dma.done [#allocation3], 256
    $region105: #{pmf_encoder_forward.1} parent=1 // pred_fallthru
      _
    %916 = vsyncpa [#allocation3], 1

</llo_original>
